<compile_context>
chip_gen: v6e
topology: v6e:2x2x1
jax: 0.10.0
libtpu: 0.0.40
codegen_flags: <defaults>
</compile_context>

<pallas_src>
import functools
from typing import NamedTuple

import jax
import jax.numpy as jnp
from jax.experimental import pallas as pl
from jax.experimental.pallas import tpu as pltpu


# ------------------------------------------------------------------
# Bilinear (align_corners=True) interpolation matrix (wrapper-side glue).
#   src = out_idx * (n_in - 1) / (n_out - 1)
# ------------------------------------------------------------------
def _bilinear_matrix(n_in: int, n_out: int) -> jnp.ndarray:
    idx = jnp.arange(n_out, dtype=jnp.float32)
    if n_out == 1:
        src = jnp.zeros((1,), jnp.float32)
    else:
        src = idx * (n_in - 1) / (n_out - 1)
    lo = jnp.clip(jnp.floor(src).astype(jnp.int32), 0, n_in - 1)
    hi = jnp.minimum(lo + 1, n_in - 1)
    frac = src - lo.astype(jnp.float32)
    r = jnp.arange(n_out)
    m = jnp.zeros((n_out, n_in), jnp.float32)
    m = m.at[r, lo].add(1.0 - frac)
    m = m.at[r, hi].add(frac)
    return m


# ------------------------------------------------------------------
# Per-stage operator matrices (hoisted out of the jitted forward).
#
# For input (H, W, Cin) viewed lane-dense as x2d (H, W*Cin):
#   uh_bd : (Nb*2H, Nb*3H) bf16  block-diag over batch of the kh-concatenated,
#                                row-shifted bilinear H-upsample (zero rows =
#                                H halo for padding=1)
#   mcat  : (W*Cin, 3*L)  bf16   hconcat over kh of
#                                [bilinear W-upsample + W halo] @ conv-tap kh
#   b_row : (1, L)        f32    bias tiled along W;  L = 2W*Cout
# ------------------------------------------------------------------
def _make_stage_consts(H, W, Cin, Cout, w_hwio, b, nb):
    f32 = jnp.float32
    Uh = _bilinear_matrix(H, 2 * H)                    # (2H, H)
    zrow = jnp.zeros((1, H), f32)
    uh_kh = [
        jnp.concatenate([zrow, Uh[:-1]], axis=0),      # kh=0 -> uses upsampled row r-1
        Uh,                                            # kh=1 -> row r
        jnp.concatenate([Uh[1:], zrow], axis=0),       # kh=2 -> row r+1
    ]
    uh_cat = jnp.concatenate(uh_kh, axis=1)            # (2H, 3H)
    uh_bd = jnp.kron(jnp.eye(nb, dtype=f32), uh_cat)   # (Nb*2H, Nb*3H)

    # W-upsample with zero halo columns folded in:
    Uw = _bilinear_matrix(W, 2 * W)                    # (2W, W)
    Uw_padded = jnp.concatenate(
        [jnp.zeros((1, W), f32), Uw, jnp.zeros((1, W), f32)], axis=0
    )                                                  # (2W+2, W)
    MwPad = jnp.kron(Uw_padded.T, jnp.eye(Cin, dtype=f32))  # (W*Cin, (2W+2)*Cin)

    # Conv tap matrices (banded block-Toeplitz), one per kh:
    twoW = 2 * W
    L = twoW * Cout
    s_idx = jnp.arange(twoW + 2)[None, :, None]
    t_idx = jnp.arange(twoW)[None, None, :]
    kw_idx = jnp.arange(3)[:, None, None]
    S = (s_idx == t_idx + kw_idx).astype(f32)          # (3, 2W+2, 2W)
    R = jnp.einsum("kst,hkio->hsito", S, w_hwio.astype(f32))
    Mconv = R.reshape(3, (twoW + 2) * Cin, L)
    mcomb = jnp.einsum("ij,hjk->hik", MwPad, Mconv)    # (3, W*Cin, L)
    mcat = jnp.concatenate([mcomb[0], mcomb[1], mcomb[2]], axis=1)  # (W*Cin, 3L)

    b_row = jnp.tile(b.astype(f32), twoW).reshape(1, L)
    return (uh_bd.astype(jnp.bfloat16),                # bf16 MXU operands
            mcat.astype(jnp.bfloat16),
            b_row)                                     # bias stays f32


class UpConvMeta(NamedTuple):
    steps: int          # grid steps (<=2, keeps both v7x TCs busy)
    nb: int             # images folded into M per grid step
    h0: int
    w0: int
    cin: int
    stage_h: tuple      # per-stage per-image input rows
    stage_l: tuple      # per-stage output lanes (2W*Cout)
    out_h: int
    out_w: int
    out_c: int
    flops: int
    bytes_accessed: int


def precompute_up_conv_consts(params, in_c, H, W, batch, scale=4, max_grid_steps=2):
    """Once-per-weight-set precompute (kron/einsum hoisted out of the forward)."""
    steps = max_grid_steps if (max_grid_steps > 0 and batch % max_grid_steps == 0) else 1
    nb = batch // steps

    convs = [(params["w1"], params["b1"])]
    if scale == 4:
        convs.append((params["w2"], params["b2"]))

    stage_arrays = []
    stage_h, stage_l = [], []
    h, w, c = H, W, in_c
    flops = 0
    for (wk, bk) in convs:
        cout = wk.shape[-1]
        uh_bd, mcat, b_row = _make_stage_consts(h, w, c, cout, wk, bk, nb)
        stage_arrays += [uh_bd, mcat, b_row]
        L = 2 * w * cout
        stage_h.append(h)
        stage_l.append(L)
        flops += steps * (2 * (nb * h) * (w * c) * (3 * L)          # matmul 1
                          + 2 * (nb * 2 * h) * (nb * 3 * h) * L)    # matmul 2
        h, w, c = 2 * h, 2 * w, cout

    const_bytes = sum(int(a.size) * a.dtype.itemsize for a in stage_arrays)
    io_bytes = batch * H * W * in_c * 4 + batch * h * w * c * 4
    meta = UpConvMeta(steps=steps, nb=nb, h0=H, w0=W, cin=in_c,
                      stage_h=tuple(stage_h), stage_l=tuple(stage_l),
                      out_h=h, out_w=w, out_c=c,
                      flops=int(flops),
                      bytes_accessed=int(const_bytes + io_bytes))
    return tuple(stage_arrays), meta


# ------------------------------------------------------------------
# Fused kernel: all stages for a block of Nb images, 2 MXU matmuls per stage,
# intermediates in VMEM/vregs, bf16 operands + f32 accumulation.
# ------------------------------------------------------------------
def _make_fused_kernel(n_stages, nb, stage_h, stage_l):
    bf16 = jnp.bfloat16

    def kernel(x_ref, *refs):
        o_ref = refs[-1]
        stage_refs = refs[:-1]
        xb = x_ref[...]                                      # (Nb, H0, W0*Cin) f32
        xm = xb.reshape(nb * xb.shape[1], xb.shape[2])       # fold batch into M
        for s in range(n_stages):
            uhbd_ref, mcat_ref, brow_ref = stage_refs[3 * s: 3 * s + 3]
            H = stage_h[s]
            L = stage_l[s]
            # MXU matmul 1: (Nb*H, W*Cin) @ (W*Cin, 3L); bf16 in, f32 acc.
            t = jnp.dot(xm.astype(bf16), mcat_ref[...],
                        preferred_element_type=jnp.float32)
            t = t.astype(bf16)
            # Restack the 3 lane-aligned kh column blocks (L % 128 == 0 ->
            # free lane slices; H % 16 == 0 -> sublane-aligned row slices).
            parts = []
            for b in range(nb):
                for kh in range(3):
                    parts.append(t[b * H:(b + 1) * H, kh * L:(kh + 1) * L])
            t_st = jnp.concatenate(parts, axis=0)            # (Nb*3H, L) bf16
            # MXU matmul 2: block-diag row-upsample (+ row halo) per image.
            y = jnp.dot(uhbd_ref[...], t_st,
                        preferred_element_type=jnp.float32)  # (Nb*2H, L) f32
            xm = y + brow_ref[...]                           # f32 bias add (VPU)
        o_ref[...] = xm.reshape(o_ref.shape).astype(o_ref.dtype)

    return kernel


def _const_spec(shape):
    """BlockSpec for a grid-invariant operand: single-buffered (no double buffer)."""
    zeros = (0,) * len(shape)
    index_map = lambda n: zeros
    try:
        return pl.BlockSpec(shape, index_map, pipeline_mode=pl.Buffered(1))
    except (AttributeError, TypeError):   # older jax without pipeline_mode
        return pl.BlockSpec(shape, index_map)


# ------------------------------------------------------------------
# Module wrapper (parameters + forward)
# ------------------------------------------------------------------
def init_up_conv_params(key, in_c, out_c, scale=4):
    # Deterministic init mimicking PyTorch Conv2d default bounds (1/sqrt(fan_in)).
    # Weights are HWIO; PyTorch OIHW checkpoints need permute(2, 3, 1, 0).
    k1, k2, k3, k4 = jax.random.split(key, 4)
    bound1 = 1.0 / (in_c * 9) ** 0.5
    params = {
        "w1": jax.random.uniform(k1, (3, 3, in_c, out_c), jnp.float32, -bound1, bound1),
        "b1": jax.random.uniform(k2, (out_c,), jnp.float32, -bound1, bound1),
    }
    if scale == 4:
        bound2 = 1.0 / (out_c * 9) ** 0.5
        params["w2"] = jax.random.uniform(k3, (3, 3, out_c, out_c), jnp.float32, -bound2, bound2)
        params["b2"] = jax.random.uniform(k4, (out_c,), jnp.float32, -bound2, bound2)
    return params


@functools.partial(jax.jit, static_argnames=("meta",))
def up_conv_forward(x_nchw, consts, meta):
    # x_nchw: (N, C, H, W) float32, matching PyTorch input layout.
    N, Cin, H, W = x_nchw.shape
    assert (Cin, H, W) == (meta.cin, meta.h0, meta.w0)
    assert N == meta.steps * meta.nb
    # NCHW -> lane-dense (N, H, W*Cin).  For chained UNet blocks keep the
    # lane-dense NHWC form between layers instead of this per-layer transpose.
    x2d = jnp.transpose(x_nchw, (0, 2, 3, 1)).reshape(N, H, W * Cin)

    n_stages = len(consts) // 3
    nb = meta.nb
    out_lanes = meta.out_w * meta.out_c                 # multiple of 128 here

    in_specs = [pl.BlockSpec((nb, H, W * Cin), lambda n: (n, 0, 0))]
    for s in range(n_stages):
        uh_bd, mcat, b_row = consts[3 * s: 3 * s + 3]
        in_specs += [_const_spec(uh_bd.shape),
                     _const_spec(mcat.shape),
                     _const_spec(b_row.shape)]

    out = pl.pallas_call(
        _make_fused_kernel(n_stages, nb, meta.stage_h, meta.stage_l),
        out_shape=jax.ShapeDtypeStruct((N, meta.out_h, out_lanes), x_nchw.dtype),
        grid=(meta.steps,),
        in_specs=in_specs,
        out_specs=pl.BlockSpec((nb, meta.out_h, out_lanes), lambda n: (n, 0, 0)),
        compiler_params=pltpu.CompilerParams(dimension_semantics=("parallel",)),
        cost_estimate=pl.CostEstimate(flops=meta.flops, transcendentals=0,
                                      bytes_accessed=meta.bytes_accessed),
    )(x2d, *consts)

    # lane-dense (N, H_f, W_f*Cout) -> NCHW (PyTorch semantics)
    return jnp.transpose(out.reshape(N, meta.out_h, meta.out_w, meta.out_c),
                         (0, 3, 1, 2))


# ------------------------------------------------------------------
# Pure-JAX reference (for a correctness sanity check only)
# ------------------------------------------------------------------
def _reference_forward(x_nchw, params, scale=4):
    x = jnp.transpose(x_nchw, (0, 2, 3, 1))            # NHWC

    def up(x):
        _, h, w, _ = x.shape
        uh = _bilinear_matrix(h, 2 * h)
        uw = _bilinear_matrix(w, 2 * w)
        return jnp.einsum("rh,nhwc,sw->nrsc", uh, x, uw)

    def conv(x, w, b):
        y = jax.lax.conv_general_dilated(
            x, w, window_strides=(1, 1), padding="SAME",
            dimension_numbers=("NHWC", "HWIO", "NHWC"))
        return y + b

    x = conv(up(x), params["w1"], params["b1"])
    if scale == 4:
        x = conv(up(x), params["w2"], params["b2"])
    return jnp.transpose(x, (0, 3, 1, 2))


if __name__ == "__main__":
    key = jax.random.PRNGKey(0)
    kx, kp = jax.random.split(key)

    in_c, out_c, scale = 4, 4, 4
    N, H, W = 2, 16, 16
    x = jax.random.normal(kx, (N, in_c, H, W), dtype=jnp.float32)
    params = init_up_conv_params(kp, in_c, out_c, scale=scale)

    # Hoisted once-per-weight-set precompute (not inside the jitted forward).
    consts, meta = precompute_up_conv_consts(params, in_c, H, W, batch=N, scale=scale)

    y = up_conv_forward(x, consts, meta=meta)
    y = jax.block_until_ready(y)

    assert y.shape == (N, out_c, 4 * H, 4 * W), y.shape
    assert y.dtype == jnp.float32

    y_ref = _reference_forward(x, params, scale=scale)
    err = float(jnp.max(jnp.abs(y - y_ref)))
    # bf16 MXU operands with f32 accumulation through two chained 3x3-conv
    # stages: observed error ~1e-2 at these magnitudes; bound leaves headroom.
    assert err < 8e-2, f"max abs error vs reference: {err}"

    print("KERNEL_OK")
</pallas_src>

<mosaic_0001>
module attributes {stable_mosaic.version = 11 : i64} {
  func.func @kernel(%arg0: i32, %arg1: memref<1x16x64xf32, #tpu.memory_space<vmem>>, %arg2: memref<32x48xbf16, #tpu.memory_space<vmem>>, %arg3: memref<64x384xbf16, #tpu.memory_space<vmem>>, %arg4: memref<1x128xf32, #tpu.memory_space<vmem>>, %arg5: memref<64x96xbf16, #tpu.memory_space<vmem>>, %arg6: memref<128x768xbf16, #tpu.memory_space<vmem>>, %arg7: memref<1x256xf32, #tpu.memory_space<vmem>>, %arg8: memref<1x64x256xf32, #tpu.memory_space<vmem>>) attributes {dimension_semantics = [#tpu.dimension_semantics<parallel>], iteration_bounds = array<i64: 2>, scalar_prefetch = 0 : i64, scratch_operands = 0 : i64, tpu.core_type = #tpu.core_type<tc>, window_params = [{transform_indices = @transform_0, window_bounds = array<i64: 1, 16, 64>}, {pipeline_mode = #tpu.pipeline_mode<synchronous>, transform_indices = @transform_1, window_bounds = array<i64: 32, 48>}, {pipeline_mode = #tpu.pipeline_mode<synchronous>, transform_indices = @transform_2, window_bounds = array<i64: 64, 384>}, {pipeline_mode = #tpu.pipeline_mode<synchronous>, transform_indices = @transform_3, window_bounds = array<i64: 1, 128>}, {pipeline_mode = #tpu.pipeline_mode<synchronous>, transform_indices = @transform_4, window_bounds = array<i64: 64, 96>}, {pipeline_mode = #tpu.pipeline_mode<synchronous>, transform_indices = @transform_5, window_bounds = array<i64: 128, 768>}, {pipeline_mode = #tpu.pipeline_mode<synchronous>, transform_indices = @transform_6, window_bounds = array<i64: 1, 256>}, {transform_indices = @transform_7, window_bounds = array<i64: 1, 64, 256>}]} {
    %c0 = arith.constant 0 : index
    %c0_0 = arith.constant 0 : index
    %c0_1 = arith.constant 0 : index
    %0 = vector.load %arg1[%c0, %c0_0, %c0_1] : memref<1x16x64xf32, #tpu.memory_space<vmem>>, vector<1x16x64xf32>
    %1 = vector.shape_cast %0 : vector<1x16x64xf32> to vector<16x64xf32>
    %2 = arith.truncf %1 : vector<16x64xf32> to vector<16x64xbf16>
    %c0_2 = arith.constant 0 : index
    %c0_3 = arith.constant 0 : index
    %3 = vector.load %arg3[%c0_2, %c0_3] : memref<64x384xbf16, #tpu.memory_space<vmem>>, vector<64x384xbf16>
    %cst = arith.constant dense<0.000000e+00> : vector<16x384xf32>
    %4 = tpu.matmul %2, %3, %cst {dimension_numbers = #tpu.dot_dimension_numbers<[1], [0], [0], [1], [0, 0, 1, 1], [], []>} : vector<16x64xbf16>, vector<64x384xbf16>, vector<16x384xf32> -> vector<16x384xf32>
    %5 = arith.truncf %4 : vector<16x384xf32> to vector<16x384xbf16>
    %6 = vector.extract_strided_slice %5 {offsets = [0, 0], sizes = [16, 128], strides = [1, 1]} : vector<16x384xbf16> to vector<16x128xbf16>
    %7 = vector.extract_strided_slice %5 {offsets = [0, 128], sizes = [16, 128], strides = [1, 1]} : vector<16x384xbf16> to vector<16x128xbf16>
    %8 = vector.extract_strided_slice %5 {offsets = [0, 256], sizes = [16, 128], strides = [1, 1]} : vector<16x384xbf16> to vector<16x128xbf16>
    %9 = tpu.concatenate %6, %7, %8 in 0 : vector<16x128xbf16>, vector<16x128xbf16>, vector<16x128xbf16> -> vector<48x128xbf16>
    %c0_4 = arith.constant 0 : index
    %c0_5 = arith.constant 0 : index
    %10 = vector.load %arg2[%c0_4, %c0_5] : memref<32x48xbf16, #tpu.memory_space<vmem>>, vector<32x48xbf16>
    %cst_6 = arith.constant dense<0.000000e+00> : vector<32x128xf32>
    %11 = tpu.matmul %10, %9, %cst_6 {dimension_numbers = #tpu.dot_dimension_numbers<[1], [0], [0], [1], [0, 0, 1, 1], [], []>} : vector<32x48xbf16>, vector<48x128xbf16>, vector<32x128xf32> -> vector<32x128xf32>
    %c0_7 = arith.constant 0 : index
    %c0_8 = arith.constant 0 : index
    %12 = vector.load %arg4[%c0_7, %c0_8] : memref<1x128xf32, #tpu.memory_space<vmem>>, vector<1x128xf32>
    %13 = vector.broadcast %12 : vector<1x128xf32> to vector<32x128xf32>
    %14 = arith.addf %11, %13 : vector<32x128xf32>
    %15 = arith.truncf %14 : vector<32x128xf32> to vector<32x128xbf16>
    %c0_9 = arith.constant 0 : index
    %c0_10 = arith.constant 0 : index
    %16 = vector.load %arg6[%c0_9, %c0_10] : memref<128x768xbf16, #tpu.memory_space<vmem>>, vector<128x768xbf16>
    %cst_11 = arith.constant dense<0.000000e+00> : vector<32x768xf32>
    %17 = tpu.matmul %15, %16, %cst_11 {dimension_numbers = #tpu.dot_dimension_numbers<[1], [0], [0], [1], [0, 0, 1, 1], [], []>} : vector<32x128xbf16>, vector<128x768xbf16>, vector<32x768xf32> -> vector<32x768xf32>
    %18 = arith.truncf %17 : vector<32x768xf32> to vector<32x768xbf16>
    %19 = vector.extract_strided_slice %18 {offsets = [0, 0], sizes = [32, 256], strides = [1, 1]} : vector<32x768xbf16> to vector<32x256xbf16>
    %20 = vector.extract_strided_slice %18 {offsets = [0, 256], sizes = [32, 256], strides = [1, 1]} : vector<32x768xbf16> to vector<32x256xbf16>
    %21 = vector.extract_strided_slice %18 {offsets = [0, 512], sizes = [32, 256], strides = [1, 1]} : vector<32x768xbf16> to vector<32x256xbf16>
    %22 = tpu.concatenate %19, %20, %21 in 0 : vector<32x256xbf16>, vector<32x256xbf16>, vector<32x256xbf16> -> vector<96x256xbf16>
    %c0_12 = arith.constant 0 : index
    %c0_13 = arith.constant 0 : index
    %23 = vector.load %arg5[%c0_12, %c0_13] : memref<64x96xbf16, #tpu.memory_space<vmem>>, vector<64x96xbf16>
    %cst_14 = arith.constant dense<0.000000e+00> : vector<64x256xf32>
    %24 = tpu.matmul %23, %22, %cst_14 {dimension_numbers = #tpu.dot_dimension_numbers<[1], [0], [0], [1], [0, 0, 1, 1], [], []>} : vector<64x96xbf16>, vector<96x256xbf16>, vector<64x256xf32> -> vector<64x256xf32>
    %c0_15 = arith.constant 0 : index
    %c0_16 = arith.constant 0 : index
    %25 = vector.load %arg7[%c0_15, %c0_16] : memref<1x256xf32, #tpu.memory_space<vmem>>, vector<1x256xf32>
    %26 = vector.broadcast %25 : vector<1x256xf32> to vector<64x256xf32>
    %27 = arith.addf %24, %26 : vector<64x256xf32>
    %28 = vector.shape_cast %27 : vector<64x256xf32> to vector<1x64x256xf32>
    %c0_17 = arith.constant 0 : index
    %c0_18 = arith.constant 0 : index
    %c0_19 = arith.constant 0 : index
    %29 = vector.load %arg8[%c0_17, %c0_18, %c0_19] : memref<1x64x256xf32, #tpu.memory_space<vmem>>, vector<1x64x256xf32>
    tpu.vector_store %arg8[%c0_17, %c0_18, %c0_19], %28 {strides = array<i32>} : memref<1x64x256xf32, #tpu.memory_space<vmem>>, vector<1x64x256xf32>,
    return
  }
  func.func @transform_0(%arg0: i32) -> (i32, i32, i32) {
    %c0_i32 = arith.constant 0 : i32
    %c0_i32_0 = arith.constant 0 : i32
    %c0_i32_1 = arith.constant 0 : i32
    return %arg0, %c0_i32, %c0_i32_0 : i32, i32, i32
  }
  func.func @transform_1(%arg0: i32) -> (i32, i32) {
    %c0_i32 = arith.constant 0 : i32
    %c0_i32_0 = arith.constant 0 : i32
    %c0_i32_1 = arith.constant 0 : i32
    return %c0_i32, %c0_i32_0 : i32, i32
  }
  func.func @transform_2(%arg0: i32) -> (i32, i32) {
    %c0_i32 = arith.constant 0 : i32
    %c0_i32_0 = arith.constant 0 : i32
    %c0_i32_1 = arith.constant 0 : i32
    return %c0_i32, %c0_i32_0 : i32, i32
  }
  func.func @transform_3(%arg0: i32) -> (i32, i32) {
    %c0_i32 = arith.constant 0 : i32
    %c0_i32_0 = arith.constant 0 : i32
    %c0_i32_1 = arith.constant 0 : i32
    return %c0_i32, %c0_i32_0 : i32, i32
  }
  func.func @transform_4(%arg0: i32) -> (i32, i32) {
    %c0_i32 = arith.constant 0 : i32
    %c0_i32_0 = arith.constant 0 : i32
    %c0_i32_1 = arith.constant 0 : i32
    return %c0_i32, %c0_i32_0 : i32, i32
  }
  func.func @transform_5(%arg0: i32) -> (i32, i32) {
    %c0_i32 = arith.constant 0 : i32
    %c0_i32_0 = arith.constant 0 : i32
    %c0_i32_1 = arith.constant 0 : i32
    return %c0_i32, %c0_i32_0 : i32, i32
  }
  func.func @transform_6(%arg0: i32) -> (i32, i32) {
    %c0_i32 = arith.constant 0 : i32
    %c0_i32_0 = arith.constant 0 : i32
    %c0_i32_1 = arith.constant 0 : i32
    return %c0_i32, %c0_i32_0 : i32, i32
  }
  func.func @transform_7(%arg0: i32) -> (i32, i32, i32) {
    %c0_i32 = arith.constant 0 : i32
    %c0_i32_0 = arith.constant 0 : i32
    %c0_i32_1 = arith.constant 0 : i32
    return %arg0, %c0_i32, %c0_i32_0 : i32, i32, i32
  }
}

</mosaic_0001>

<llo_original>
// kernel: up_conv_forward.1
$region0: #{up_conv_forward.1}
  #allocation0 [shape = 'u32[]', space=smem, size = 0x4, offset = 0x4, fixed_abs, tag = 'smem constant byte address 0x4 - core index']
  #allocation1 [shape = 'u32[144,128]{1,0:T(1,128)}', space=vmem, size = 0x12000, scoped, tag = 'internal scratch']
  %s0 = inlined_call_operand.vmem [shape: f32[2,16,64], index: 0, kind: input, shape index: {}]
  %s1 = inlined_call_operand.hbm [shape: bf16[32,48], index: 1, kind: input, shape index: {}]
  %s2 = inlined_call_operand.hbm [shape: bf16[64,384], index: 2, kind: input, shape index: {}]
  %s3 = inlined_call_operand.vmem [shape: f32[1,128], index: 3, kind: input, shape index: {}]
  %s4 = inlined_call_operand.vmem [shape: bf16[64,96], index: 4, kind: input, shape index: {}]
  %s5 = inlined_call_operand.vmem [shape: bf16[128,768], index: 5, kind: input, shape index: {}]
  %s6 = inlined_call_operand.vmem [shape: f32[1,256], index: 6, kind: input, shape index: {}]
  %s7 = inlined_call_operand.vmem [shape: f32[2,64,256], index: 7, kind: output, shape index: {}]
  %s8 = sld [smem:[#allocation0]]
  $region69: #{up_conv_forward.1} parent=0
    _
  %s10 = ssub.s32 1, %s8
  %s11 = scalar_select 0, %s10, %s8
  $region1: #{up_conv_forward.1} parent=0
    #allocation2 [shape = 'u8[8192]{0}', space=vmem, size = 0x2000, scoped, tag = 'input window, operand 1, single buffered']
    #allocation3 [shape = 's32[2]{0}', space=sflag, size = 0x8, scoped, tag = 'scoped memory for up_conv_forward.1']
    #allocation4 [shape = 'u8[49152]{0}', space=vmem, size = 0xc000, scoped, tag = 'input window, operand 2, single buffered']
    #allocation5 [shape = 's32[1]{0}', space=sflag, size = 0x4, scoped, tag = 'scoped memory for up_conv_forward.1']
    %12 = vsyncpa [#allocation3], 0
    %13 = vsyncpa [#allocation5], 0
    loop: start=0, step=1, limit=4
    $region2: #{up_conv_forward.1} parent=1 // loop_pre_header
      _
    $region3: #{up_conv_forward.1} parent=1 // loop_header
      %s15 = sphi 0, %s19
      %p16 = scmp.ge.s32.totalorder %s15, 4
      %s25 = sphi 0, %s27
      %s28 = sphi 0, %s25
      %s29 = sphi 0, %s28
      %s45 = sphi 0, %s29
      %s49 = sphi 0, %s49
      %s51 = sphi 0, %s49
      %s52 = sphi 0, %s51
      %s66 = sphi 0, %s52
      %s70 = sphi 0, %s70
      %s72 = sphi 0, %s70
      %s73 = sphi 0, %s72
      %s87 = sphi 0, %s73
      %s91 = sphi 0, %s91
      %s93 = sphi 0, %s91
      %s94 = sphi 0, %s93
      %s108 = sphi 0, %s94
      %s112 = sphi 0, %s112
      %s114 = sphi 0, %s112
      %s115 = sphi 0, %s114
      %s129 = sphi 0, %s115
      %s133 = sphi 0, %s133
      %s135 = sphi 0, %s133
      %s136 = sphi 0, %s135
      %s150 = sphi 0, %s136
      %s154 = sphi 0, %s154
      %s156 = sphi 0, %s154
      %s157 = sphi 0, %s156
      %s171 = sphi 0, %s157
      %s177 = sphi 0, %s179
      %s180 = sphi 0, %s177
      %s181 = sphi 0, %s180
      %s197 = sphi 0, %s181
    $region4: #{up_conv_forward.1} parent=1 // loop_header_branch
      %18 = sbr.rel (%p16) target = $region8
    $region5: #{up_conv_forward.1} parent=1 // loop_body
      %s20 = ssub.s32 %s15, 1
      %s21 = ssub.s32 %s15, 2
      %s22 = sadd.s32 %s15, 1
      %s23 = ssub.s32 %s15, %s22
      %p24 = scmp.eq.s32.totalorder %s23, 0
      %s26 = sadd.s32 %s25, 1
      %s27 = scalar_select %p24, %s25, %s26
      %p30 = pneg %p24
      %p31 = scmp.eq.s32.totalorder %s15, 1
      %p32 = por %p30, %p31
      %p33 = scmp.ne.s32.totalorder %s25, %s28
      %p34 = scmp.eq.s32.totalorder %s15, 0
      %p35 = por %p33, %p34
      %p36 = scmp.ne.s32.totalorder %s25, %s28
      %p37 = scmp.eq.s32.totalorder %s20, 1
      %p38 = por %p36, %p37
      %p39 = scmp.ne.s32.totalorder %s28, %s29
      %p40 = scmp.eq.s32.totalorder %s20, 0
      %p41 = por %p39, %p40
      %p42 = scmp.ne.s32.totalorder %s28, %s29
      %p43 = scmp.eq.s32.totalorder %s21, 1
      %p44 = por %p42, %p43
      %p46 = scmp.ne.s32.totalorder %s29, %s45
      %p47 = scmp.eq.s32.totalorder %s21, 0
      %p48 = por %p46, %p47
      %s50 = sadd.s32 %s49, 1
      %p53 = scmp.eq.s32.totalorder %s15, 1
      %p54 = scmp.ne.s32.totalorder %s49, %s51
      %p55 = scmp.eq.s32.totalorder %s15, 0
      %p56 = por %p54, %p55
      %p57 = scmp.ne.s32.totalorder %s49, %s51
      %p58 = scmp.eq.s32.totalorder %s20, 1
      %p59 = por %p57, %p58
      %p60 = scmp.ne.s32.totalorder %s51, %s52
      %p61 = scmp.eq.s32.totalorder %s20, 0
      %p62 = por %p60, %p61
      %p63 = scmp.ne.s32.totalorder %s51, %s52
      %p64 = scmp.eq.s32.totalorder %s21, 1
      %p65 = por %p63, %p64
      %p67 = scmp.ne.s32.totalorder %s52, %s66
      %p68 = scmp.eq.s32.totalorder %s21, 0
      %p69 = por %p67, %p68
      %s71 = sadd.s32 %s70, 1
      %p74 = scmp.eq.s32.totalorder %s15, 1
      %p75 = scmp.ne.s32.totalorder %s70, %s72
      %p76 = scmp.eq.s32.totalorder %s15, 0
      %p77 = por %p75, %p76
      %p78 = scmp.ne.s32.totalorder %s70, %s72
      %p79 = scmp.eq.s32.totalorder %s20, 1
      %p80 = por %p78, %p79
      %p81 = scmp.ne.s32.totalorder %s72, %s73
      %p82 = scmp.eq.s32.totalorder %s20, 0
      %p83 = por %p81, %p82
      %p84 = scmp.ne.s32.totalorder %s72, %s73
      %p85 = scmp.eq.s32.totalorder %s21, 1
      %p86 = por %p84, %p85
      %p88 = scmp.ne.s32.totalorder %s73, %s87
      %p89 = scmp.eq.s32.totalorder %s21, 0
      %p90 = por %p88, %p89
      %s92 = sadd.s32 %s91, 1
      %p95 = scmp.eq.s32.totalorder %s15, 1
      %p96 = scmp.ne.s32.totalorder %s91, %s93
      %p97 = scmp.eq.s32.totalorder %s15, 0
      %p98 = por %p96, %p97
      %p99 = scmp.ne.s32.totalorder %s91, %s93
      %p100 = scmp.eq.s32.totalorder %s20, 1
      %p101 = por %p99, %p100
      %p102 = scmp.ne.s32.totalorder %s93, %s94
      %p103 = scmp.eq.s32.totalorder %s20, 0
      %p104 = por %p102, %p103
      %p105 = scmp.ne.s32.totalorder %s93, %s94
      %p106 = scmp.eq.s32.totalorder %s21, 1
      %p107 = por %p105, %p106
      %p109 = scmp.ne.s32.totalorder %s94, %s108
      %p110 = scmp.eq.s32.totalorder %s21, 0
      %p111 = por %p109, %p110
      %s113 = sadd.s32 %s112, 1
      %p116 = scmp.eq.s32.totalorder %s15, 1
      %p117 = scmp.ne.s32.totalorder %s112, %s114
      %p118 = scmp.eq.s32.totalorder %s15, 0
      %p119 = por %p117, %p118
      %p120 = scmp.ne.s32.totalorder %s112, %s114
      %p121 = scmp.eq.s32.totalorder %s20, 1
      %p122 = por %p120, %p121
      %p123 = scmp.ne.s32.totalorder %s114, %s115
      %p124 = scmp.eq.s32.totalorder %s20, 0
      %p125 = por %p123, %p124
      %p126 = scmp.ne.s32.totalorder %s114, %s115
      %p127 = scmp.eq.s32.totalorder %s21, 1
      %p128 = por %p126, %p127
      %p130 = scmp.ne.s32.totalorder %s115, %s129
      %p131 = scmp.eq.s32.totalorder %s21, 0
      %p132 = por %p130, %p131
      %s134 = sadd.s32 %s133, 1
      %p137 = scmp.eq.s32.totalorder %s15, 1
      %p138 = scmp.ne.s32.totalorder %s133, %s135
      %p139 = scmp.eq.s32.totalorder %s15, 0
      %p140 = por %p138, %p139
      %p141 = scmp.ne.s32.totalorder %s133, %s135
      %p142 = scmp.eq.s32.totalorder %s20, 1
      %p143 = por %p141, %p142
      %p144 = scmp.ne.s32.totalorder %s135, %s136
      %p145 = scmp.eq.s32.totalorder %s20, 0
      %p146 = por %p144, %p145
      %p147 = scmp.ne.s32.totalorder %s135, %s136
      %p148 = scmp.eq.s32.totalorder %s21, 1
      %p149 = por %p147, %p148
      %p151 = scmp.ne.s32.totalorder %s136, %s150
      %p152 = scmp.eq.s32.totalorder %s21, 0
      %p153 = por %p151, %p152
      %s155 = sadd.s32 %s154, 1
      %p158 = scmp.eq.s32.totalorder %s15, 1
      %p159 = scmp.ne.s32.totalorder %s154, %s156
      %p160 = scmp.eq.s32.totalorder %s15, 0
      %p161 = por %p159, %p160
      %p162 = scmp.ne.s32.totalorder %s154, %s156
      %p163 = scmp.eq.s32.totalorder %s20, 1
      %p164 = por %p162, %p163
      %p165 = scmp.ne.s32.totalorder %s156, %s157
      %p166 = scmp.eq.s32.totalorder %s20, 0
      %p167 = por %p165, %p166
      %p168 = scmp.ne.s32.totalorder %s156, %s157
      %p169 = scmp.eq.s32.totalorder %s21, 1
      %p170 = por %p168, %p169
      %p172 = scmp.ne.s32.totalorder %s157, %s171
      %p173 = scmp.eq.s32.totalorder %s21, 0
      %p174 = por %p172, %p173
      %s175 = ssub.s32 %s15, %s22
      %p176 = scmp.eq.s32.totalorder %s175, 0
      %s178 = sadd.s32 %s177, 1
      %s179 = scalar_select %p176, %s177, %s178
      %p182 = pneg %p176
      %p183 = scmp.eq.s32.totalorder %s15, 1
      %p184 = por %p182, %p183
      %p185 = scmp.ne.s32.totalorder %s177, %s180
      %p186 = scmp.eq.s32.totalorder %s15, 0
      %p187 = por %p185, %p186
      %p188 = scmp.ne.s32.totalorder %s177, %s180
      %p189 = scmp.eq.s32.totalorder %s20, 1
      %p190 = por %p188, %p189
      %p191 = scmp.ne.s32.totalorder %s180, %s181
      %p192 = scmp.eq.s32.totalorder %s20, 0
      %p193 = por %p191, %p192
      %p194 = scmp.ne.s32.totalorder %s180, %s181
      %p195 = scmp.eq.s32.totalorder %s21, 1
      %p196 = por %p194, %p195
      %p198 = scmp.ne.s32.totalorder %s181, %s197
      %p199 = scmp.eq.s32.totalorder %s21, 0
      %p200 = por %p198, %p199
      %p201 = scmp.le.s32.totalorder 1, %s15
      %p202 = scmp.lt.s32.totalorder %s15, 3
      %p203 = pnand %p201, %p202
      %p204 = pneg %p203
      // Predicated region
      $region9: #{up_conv_forward.1} parent=5 // pred_check
        _
      $region10: #{up_conv_forward.1} parent=5 // pred_check_branch
        %206 = sbr.rel (%p203) target = $region12
      $region11: #{up_conv_forward.1} parent=5 // pred_region
        %s207 = ssub.s32 %s15, 1
        // Predicated region
        $region13: #{up_conv_forward.1} parent=11 // pred_check
          %p208 = pneg %p62
        $region14: #{up_conv_forward.1} parent=11 // pred_check_branch
          %210 = sbr.rel (%p208) target = $region16
        $region15: #{up_conv_forward.1} parent=11 // pred_region
          %s212 = ssub.s32 256, 256
          %213 = vsyncadd [#allocation3], %s212
          %s214 = sshll.u32 [#allocation2], 4
          %s215 = int_to_ptr.vmem [resolvable:$true] %s214
          %220 = dma.hbm_to_vmem [thread:$0]  %s1, 256, %s215, [#allocation3], 64, 64, 4
        $region16: #{up_conv_forward.1} parent=11 // pred_fallthru
          _
        // Predicated region
        $region17: #{up_conv_forward.1} parent=11 // pred_check
          %p221 = pneg %p83
        $region18: #{up_conv_forward.1} parent=11 // pred_check_branch
          %223 = sbr.rel (%p221) target = $region20
        $region19: #{up_conv_forward.1} parent=11 // pred_region
          %s225 = ssub.s32 1536, 1536
          %226 = vsyncadd [#allocation5], %s225
          %s227 = sshll.u32 [#allocation4], 4
          %s228 = int_to_ptr.vmem [resolvable:$true] %s227
          %233 = dma.hbm_to_vmem [thread:$0]  %s2, 1536, %s228, [#allocation5], 192, 192, 12
        $region20: #{up_conv_forward.1} parent=11 // pred_fallthru
          _
        // Predicated region
        $region21: #{up_conv_forward.1} parent=11 // pred_check
          %p234 = pneg %p104
        $region22: #{up_conv_forward.1} parent=11 // pred_check_branch
          %236 = sbr.rel (%p234) target = $region24
        $region23: #{up_conv_forward.1} parent=11 // pred_region
          _
        $region24: #{up_conv_forward.1} parent=11 // pred_fallthru
          _
        // Predicated region
        $region25: #{up_conv_forward.1} parent=11 // pred_check
          %p237 = pneg %p125
        $region26: #{up_conv_forward.1} parent=11 // pred_check_branch
          %239 = sbr.rel (%p237) target = $region28
        $region27: #{up_conv_forward.1} parent=11 // pred_region
          _
        $region28: #{up_conv_forward.1} parent=11 // pred_fallthru
          _
        // Predicated region
        $region29: #{up_conv_forward.1} parent=11 // pred_check
          %p240 = pneg %p146
        $region30: #{up_conv_forward.1} parent=11 // pred_check_branch
          %242 = sbr.rel (%p240) target = $region32
        $region31: #{up_conv_forward.1} parent=11 // pred_region
          _
        $region32: #{up_conv_forward.1} parent=11 // pred_fallthru
          _
        // Predicated region
        $region33: #{up_conv_forward.1} parent=11 // pred_check
          %p243 = pneg %p167
        $region34: #{up_conv_forward.1} parent=11 // pred_check_branch
          %245 = sbr.rel (%p243) target = $region36
        $region35: #{up_conv_forward.1} parent=11 // pred_region
          _
        $region36: #{up_conv_forward.1} parent=11 // pred_fallthru
          _
      $region12: #{up_conv_forward.1} parent=5 // pred_fallthru
        _
      %p246 = scmp.lt.s32.totalorder %s15, 2
      // Predicated region
      $region37: #{up_conv_forward.1} parent=5 // pred_check
        %p247 = pneg %p246
      $region38: #{up_conv_forward.1} parent=5 // pred_check_branch
        %249 = sbr.rel (%p247) target = $region40
      $region39: #{up_conv_forward.1} parent=5 // pred_region
        // Predicated region
        $region41: #{up_conv_forward.1} parent=39 // pred_check
          %p250 = pneg %p35
        $region42: #{up_conv_forward.1} parent=39 // pred_check_branch
          %252 = sbr.rel (%p250) target = $region44
        $region43: #{up_conv_forward.1} parent=39 // pred_region
          %p253 = scmp.lt.s32.totalorder %s15, 1
          %s254 = scalar_select %p253, %s15, 1
          %s255 = smul.addr %s254, 2
          %s256 = smul.addr %s255, 8
          %s257 = scalar_lea.vmem %s0, %s256
        $region44: #{up_conv_forward.1} parent=39 // pred_fallthru
          _
      $region40: #{up_conv_forward.1} parent=5 // pred_fallthru
        _
      %p258 = scmp.le.s32.totalorder 1, %s15
      %p259 = scmp.lt.s32.totalorder %s15, 3
      %p260 = pnand %p258, %p259
      %p261 = pneg %p260
      // Predicated region
      $region45: #{up_conv_forward.1} parent=5 // pred_check
        _
      $region46: #{up_conv_forward.1} parent=5 // pred_check_branch
        %263 = sbr.rel (%p260) target = $region48
      $region47: #{up_conv_forward.1} parent=5 // pred_region
        %s264 = ssub.s32 %s15, 1
        // Predicated region
        $region49: #{up_conv_forward.1} parent=47 // pred_check
          %p265 = pneg %p62
        $region50: #{up_conv_forward.1} parent=47 // pred_check_branch
          %267 = sbr.rel (%p265) target = $region52
        $region51: #{up_conv_forward.1} parent=47 // pred_region
          %268 = dma.done [#allocation3], 256
        $region52: #{up_conv_forward.1} parent=47 // pred_fallthru
          _
        // Predicated region
        $region53: #{up_conv_forward.1} parent=47 // pred_check
          %p269 = pneg %p83
        $region54: #{up_conv_forward.1} parent=47 // pred_check_branch
          %271 = sbr.rel (%p269) target = $region56
        $region55: #{up_conv_forward.1} parent=47 // pred_region
          %272 = dma.done [#allocation5], 1536
        $region56: #{up_conv_forward.1} parent=47 // pred_fallthru
          _
        %p273 = scmp.lt.s32.totalorder %s20, 1
        %s274 = scalar_select %p273, %s20, 1
        %s275 = smul.addr %s274, 2
        %s276 = smul.addr %s275, 8
        %s277 = scalar_lea.vmem %s0, %s276
        %p278 = pneg %p41
        %p279 = pneg %p38
        %p280 = pneg %p62
        %p281 = pneg %p59
        %p282 = pneg %p83
        %p283 = pneg %p80
        %p284 = pneg %p104
        %p285 = pneg %p101
        %p286 = pneg %p125
        %p287 = pneg %p122
        %p288 = pneg %p146
        %p289 = pneg %p143
        %p290 = pneg %p167
        %p291 = pneg %p164
        %p292 = pneg %p193
        %p293 = pneg %p190
        %p294 = scmp.lt.s32.totalorder %s20, 1
        %s295 = scalar_select %p294, %s20, 1
        %s296 = smul.addr %s295, 16
        %s297 = smul.addr %s296, 8
        %s298 = scalar_lea.vmem %s7, %s297
        %p299 = scmp.lt.s32.totalorder %s20, 1
        %s300 = scalar_select %p299, %s20, 1
        %s301 = smul.addr %s300, 2
        %s302 = smul.addr %s301, 8
        %s303 = scalar_lea.vmem %s0, %s302
        %p304 = scmp.lt.s32.totalorder %s20, 1
        %s305 = scalar_select %p304, %s20, 1
        %s306 = smul.addr %s305, 16
        %s307 = smul.addr %s306, 8
        %s308 = scalar_lea.vmem %s7, %s307
        %v310 = vld [vmem:[%s303] sm:$0xff]
        %v311 = vld [vmem:[%s303 + $0x8] sm:$0xff]
        %v312 = vpack.c.bf16 %v311, %v310
        %v313 = vld [vmem:[#allocation4] sm:$0xff]
        %v314 = vld [vmem:[#allocation4 + $0x8] sm:$0xf]
        %v315 = vld [vmem:[#allocation4 + $0xc] sm:$0xff]
        %v316 = vld [vmem:[#allocation4 + $0x14] sm:$0xf]
        %v317 = vld [vmem:[#allocation4 + $0x18] sm:$0xff]
        %v318 = vld [vmem:[#allocation4 + $0x20] sm:$0xf]
        %v319 = vld [vmem:[#allocation4 + $0x24] sm:$0xff]
        %v320 = vld [vmem:[#allocation4 + $0x2c] sm:$0xf]
        %v321 = vld [vmem:[#allocation4 + $0x30] sm:$0xff]
        %v322 = vld [vmem:[#allocation4 + $0x38] sm:$0xf]
        %v323 = vld [vmem:[#allocation4 + $0x3c] sm:$0xff]
        %v324 = vld [vmem:[#allocation4 + $0x44] sm:$0xf]
        %v325 = vld [vmem:[#allocation4 + $0x48] sm:$0xff]
        %v326 = vld [vmem:[#allocation4 + $0x50] sm:$0xf]
        %v327 = vld [vmem:[#allocation4 + $0x54] sm:$0xff]
        %v328 = vld [vmem:[#allocation4 + $0x5c] sm:$0xf]
        %v345 = vunpack.c.l.b16 %v313
        %v346 = vunpack.c.h.b16 %v313
        %v347 = vunpack.c.l.b16 %v314
        %v348 = vunpack.c.l.b16 %v315
        %v349 = vunpack.c.h.b16 %v315
        %v350 = vunpack.c.l.b16 %v316
        %v351 = vunpack.c.l.b16 %v317
        %v352 = vunpack.c.h.b16 %v317
        %v353 = vunpack.c.l.b16 %v318
        %v354 = vunpack.c.l.b16 %v319
        %v355 = vunpack.c.h.b16 %v319
        %v356 = vunpack.c.l.b16 %v320
        %v357 = vunpack.c.l.b16 %v321
        %v358 = vunpack.c.h.b16 %v321
        %v359 = vunpack.c.l.b16 %v322
        %v360 = vunpack.c.l.b16 %v323
        %v361 = vunpack.c.h.b16 %v323
        %v362 = vunpack.c.l.b16 %v324
        %v363 = vunpack.c.l.b16 %v325
        %v364 = vunpack.c.h.b16 %v325
        %v365 = vunpack.c.l.b16 %v326
        %v366 = vunpack.c.l.b16 %v327
        %v367 = vunpack.c.h.b16 %v327
        %v368 = vunpack.c.l.b16 %v328
        %v369 = vpack.c.b16 %v348, %v345
        %v370 = vpack.c.b16 %v349, %v346
        %v371 = vpack.c.b16 %v350, %v347
        %v372 = vpack.c.b16 %v354, %v351
        %v373 = vpack.c.b16 %v355, %v352
        %v374 = vpack.c.b16 %v356, %v353
        %v375 = vpack.c.b16 %v360, %v357
        %v376 = vpack.c.b16 %v361, %v358
        %v377 = vpack.c.b16 %v362, %v359
        %v378 = vpack.c.b16 %v366, %v363
        %v379 = vpack.c.b16 %v367, %v364
        %v380 = vpack.c.b16 %v368, %v365
        %vm393 = vcmask 523264
        %v395 = vsel %vm393, %v312, 0
        %397 = vmatprep.subr.bf16.mxu0 0
        %398 = vmatpush1.bf16.msra.mxu0 0
        %399 = vmatprep.subr.bf16.mxu0 0
        %400 = vmatpush1.bf16.msra.mxu0 0
        %401 = vmatprep.subr.bf16.mxu0 0
        %402 = vmatpush1.bf16.msra.mxu0 0
        %403 = vmatprep.subr.bf16.mxu0 0
        %404 = vmatpush1.bf16.msra.mxu0 0
        %405 = vmatprep.subr.bf16.mxu0 %v379
        %406 = vmatpush1.bf16.msra.mxu0 %v378
        %407 = vmatprep.subr.bf16.mxu0 %v376
        %408 = vmatpush1.bf16.msra.mxu0 %v375
        %409 = vmatprep.subr.bf16.mxu0 %v373
        %410 = vmatpush1.bf16.msra.mxu0 %v372
        %411 = vmatprep.subr.bf16.mxu0 %v370
        %412 = vmatpush1.bf16.msra.mxu0 %v369
        %413 = vmatprep.subr.bf16.mxu0 0
        %414 = vmatpush2.bf16.msra.mxu0 0
        %415 = vmatprep.subr.bf16.mxu0 0
        %416 = vmatpush2.bf16.msra.mxu0 0
        %417 = vmatprep.subr.bf16.mxu0 0
        %418 = vmatpush2.bf16.msra.mxu0 0
        %419 = vmatprep.subr.bf16.mxu0 0
        %420 = vmatpush2.bf16.msra.mxu0 0
        %421 = vmatprep.subr.bf16.mxu0 0
        %422 = vmatpush2.bf16.msra.mxu0 0
        %423 = vmatprep.subr.bf16.mxu0 0
        %424 = vmatpush2.bf16.msra.mxu0 0
        %425 = vmatprep.subr.bf16.mxu0 0
        %426 = vmatpush2.bf16.msra.mxu0 0
        %427 = vmatprep.subr.bf16.mxu0 0
        %428 = vmatpush2.bf16.msra.mxu0 0
        %429 = vmatprep.mubr.bf16.mxu0 0
        %430 = vmatmul.mubr.bf16.gmra.mxu0 %v395
        %v431 = vpop.f32.mrf.mxu0
        %v432 = vadd.f32 0.0, %v431
        %v433 = vpop.f32.mrf.mxu0
        %v434 = vadd.f32 0.0, %v433
        %v435 = vpop.f32.mrf.mxu0
        %v436 = vadd.f32 0.0, %v435
        %v437 = vpop.f32.mrf.mxu0
        %v438 = vadd.f32 0.0, %v437
        %439 = vdwg.mxu0
        %440 = vmatprep.subr.bf16.mxu0 0
        %441 = vmatpush1.bf16.msra.mxu0 0
        %442 = vmatprep.subr.bf16.mxu0 0
        %443 = vmatpush1.bf16.msra.mxu0 0
        %444 = vmatprep.subr.bf16.mxu0 0
        %445 = vmatpush1.bf16.msra.mxu0 0
        %446 = vmatprep.subr.bf16.mxu0 0
        %447 = vmatpush1.bf16.msra.mxu0 0
        %448 = vmatprep.subr.bf16.mxu0 0
        %449 = vmatpush1.bf16.msra.mxu0 %v380
        %450 = vmatprep.subr.bf16.mxu0 0
        %451 = vmatpush1.bf16.msra.mxu0 %v377
        %452 = vmatprep.subr.bf16.mxu0 0
        %453 = vmatpush1.bf16.msra.mxu0 %v374
        %454 = vmatprep.subr.bf16.mxu0 0
        %455 = vmatpush1.bf16.msra.mxu0 %v371
        %456 = vmatprep.subr.bf16.mxu0 0
        %457 = vmatpush2.bf16.msra.mxu0 0
        %458 = vmatprep.subr.bf16.mxu0 0
        %459 = vmatpush2.bf16.msra.mxu0 0
        %460 = vmatprep.subr.bf16.mxu0 0
        %461 = vmatpush2.bf16.msra.mxu0 0
        %462 = vmatprep.subr.bf16.mxu0 0
        %463 = vmatpush2.bf16.msra.mxu0 0
        %464 = vmatprep.subr.bf16.mxu0 0
        %465 = vmatpush2.bf16.msra.mxu0 0
        %466 = vmatprep.subr.bf16.mxu0 0
        %467 = vmatpush2.bf16.msra.mxu0 0
        %468 = vmatprep.subr.bf16.mxu0 0
        %469 = vmatpush2.bf16.msra.mxu0 0
        %470 = vmatprep.subr.bf16.mxu0 0
        %471 = vmatpush2.bf16.msra.mxu0 0
        %472 = vmatprep.mubr.bf16.mxu0 0
        %473 = vmatmul.mubr.bf16.gmra.mxu0 %v395
        %v474 = vpop.f32.mrf.mxu0
        %v475 = vadd.f32 0.0, %v474
        %v476 = vpop.f32.mrf.mxu0
        %v477 = vpop.f32.mrf.mxu0
        %v478 = vadd.f32 0.0, %v477
        %v479 = vpop.f32.mrf.mxu0
        %480 = vdwg.mxu0
        %v481 = vpack.c.bf16 %v436, %v432
        %v482 = vpack.c.bf16 %v438, %v434
        %v483 = vpack.c.bf16 %v478, %v475
        %v484 = vld [vmem:[#allocation2] sm:$0xf]
        %v485 = vld [vmem:[#allocation2 + $0x4] sm:$0xf]
        %v486 = vld [vmem:[#allocation2 + $0x8] sm:$0xf]
        %v487 = vld [vmem:[#allocation2 + $0xc] sm:$0xf]
        %v488 = vld [vmem:[%s3] sm:$0x1]
        %v490 = vlaneseq
        %v491 = vshrl.u32 %v490, 7
        %v492 = vsub.s32 0, %v491
        %v493 = vrot.slane %v488, %v492
        %v499 = vunpack.c.l.b16 %v484
        %v500 = vunpack.c.l.b16 %v485
        %v501 = vunpack.c.l.b16 %v486
        %v502 = vunpack.c.l.b16 %v487
        %v503 = vpack.c.b16 %v500, %v499
        %v504 = vpack.c.b16 %v502, %v501
        %vm505 = vcmask 392192
        %v507 = vsel %vm505, %v503, 0
        %v510 = vsel %vm505, %v504, 0
        %512 = vmatprep.subr.bf16.mxu0 0
        %513 = vmatpush1.bf16.msra.mxu0 0
        %514 = vmatprep.subr.bf16.mxu0 0
        %515 = vmatpush1.bf16.msra.mxu0 0
        %516 = vmatprep.subr.bf16.mxu0 0
        %517 = vmatpush1.bf16.msra.mxu0 0
        %518 = vmatprep.subr.bf16.mxu0 0
        %519 = vmatpush1.bf16.msra.mxu0 0
        %520 = vmatprep.subr.bf16.mxu0 0
        %521 = vmatpush1.bf16.msra.mxu0 0
        %522 = vmatprep.subr.bf16.mxu0 0
        %523 = vmatpush1.bf16.msra.mxu0 %v483
        %524 = vmatprep.subr.bf16.mxu0 0
        %525 = vmatpush1.bf16.msra.mxu0 %v482
        %526 = vmatprep.subr.bf16.mxu0 0
        %527 = vmatpush1.bf16.msra.mxu0 %v481
        %528 = vmatprep.subr.bf16.mxu0 0
        %529 = vmatpush2.bf16.msra.mxu0 0
        %530 = vmatprep.subr.bf16.mxu0 0
        %531 = vmatpush2.bf16.msra.mxu0 0
        %532 = vmatprep.subr.bf16.mxu0 0
        %533 = vmatpush2.bf16.msra.mxu0 0
        %534 = vmatprep.subr.bf16.mxu0 0
        %535 = vmatpush2.bf16.msra.mxu0 0
        %536 = vmatprep.subr.bf16.mxu0 0
        %537 = vmatpush2.bf16.msra.mxu0 0
        %538 = vmatprep.subr.bf16.mxu0 0
        %539 = vmatpush2.bf16.msra.mxu0 0
        %540 = vmatprep.subr.bf16.mxu0 0
        %541 = vmatpush2.bf16.msra.mxu0 0
        %542 = vmatprep.subr.bf16.mxu0 0
        %543 = vmatpush2.bf16.msra.mxu0 0
        %544 = vmatprep.mubr.bf16.mxu0 0
        %545 = vmatmul.mubr.bf16.gmra.mxu0 %v507
        %v546 = vpop.f32.mrf.mxu0
        %v547 = vadd.f32 %v493, %v546
        %v548 = vpop.f32.mrf.mxu0
        %v549 = vpop.f32.mrf.mxu0
        %v550 = vadd.f32 %v493, %v549
        %v551 = vpop.f32.mrf.mxu0
        %552 = vmatprep.mubr.bf16.mxu0 0
        %553 = vmatmul.mubr.bf16.gmra.mxu0 %v510
        %v554 = vpop.f32.mrf.mxu0
        %v555 = vadd.f32 %v493, %v554
        %v556 = vpop.f32.mrf.mxu0
        %v557 = vpop.f32.mrf.mxu0
        %v558 = vadd.f32 %v493, %v557
        %v559 = vpop.f32.mrf.mxu0
        %560 = vdwg.mxu0
        %v561 = vpack.c.bf16 %v550, %v547
        %v562 = vpack.c.bf16 %v558, %v555
        %v563 = vld [vmem:[%s5] sm:$0xff]
        %v564 = vld [vmem:[%s5 + $0x8] sm:$0xff]
        %v565 = vld [vmem:[%s5 + $0x10] sm:$0xff]
        %v566 = vld [vmem:[%s5 + $0x18] sm:$0xff]
        %v567 = vld [vmem:[%s5 + $0x20] sm:$0xff]
        %v568 = vld [vmem:[%s5 + $0x28] sm:$0xff]
        %v569 = vld [vmem:[%s5 + $0x30] sm:$0xff]
        %v570 = vld [vmem:[%s5 + $0x38] sm:$0xff]
        %v571 = vld [vmem:[%s5 + $0x40] sm:$0xff]
        %v572 = vld [vmem:[%s5 + $0x48] sm:$0xff]
        %v573 = vld [vmem:[%s5 + $0x50] sm:$0xff]
        %v574 = vld [vmem:[%s5 + $0x58] sm:$0xff]
        %v575 = vld [vmem:[%s5 + $0x60] sm:$0xff]
        %v576 = vld [vmem:[%s5 + $0x68] sm:$0xff]
        %v577 = vld [vmem:[%s5 + $0x70] sm:$0xff]
        %v578 = vld [vmem:[%s5 + $0x78] sm:$0xff]
        %v579 = vld [vmem:[%s5 + $0x80] sm:$0xff]
        %v580 = vld [vmem:[%s5 + $0x88] sm:$0xff]
        %v581 = vld [vmem:[%s5 + $0x90] sm:$0xff]
        %v582 = vld [vmem:[%s5 + $0x98] sm:$0xff]
        %v583 = vld [vmem:[%s5 + $0xa0] sm:$0xff]
        %v584 = vld [vmem:[%s5 + $0xa8] sm:$0xff]
        %v585 = vld [vmem:[%s5 + $0xb0] sm:$0xff]
        %v586 = vld [vmem:[%s5 + $0xb8] sm:$0xff]
        %v587 = vld [vmem:[%s5 + $0xc0] sm:$0xff]
        %v588 = vld [vmem:[%s5 + $0xc8] sm:$0xff]
        %v589 = vld [vmem:[%s5 + $0xd0] sm:$0xff]
        %v590 = vld [vmem:[%s5 + $0xd8] sm:$0xff]
        %v591 = vld [vmem:[%s5 + $0xe0] sm:$0xff]
        %v592 = vld [vmem:[%s5 + $0xe8] sm:$0xff]
        %v593 = vld [vmem:[%s5 + $0xf0] sm:$0xff]
        %v594 = vld [vmem:[%s5 + $0xf8] sm:$0xff]
        %v595 = vld [vmem:[%s5 + $0x100] sm:$0xff]
        %v596 = vld [vmem:[%s5 + $0x108] sm:$0xff]
        %v597 = vld [vmem:[%s5 + $0x110] sm:$0xff]
        %v598 = vld [vmem:[%s5 + $0x118] sm:$0xff]
        %v599 = vld [vmem:[%s5 + $0x120] sm:$0xff]
        %v600 = vld [vmem:[%s5 + $0x128] sm:$0xff]
        %v601 = vld [vmem:[%s5 + $0x130] sm:$0xff]
        %v602 = vld [vmem:[%s5 + $0x138] sm:$0xff]
        %v603 = vld [vmem:[%s5 + $0x140] sm:$0xff]
        %v604 = vld [vmem:[%s5 + $0x148] sm:$0xff]
        %v605 = vld [vmem:[%s5 + $0x150] sm:$0xff]
        %v606 = vld [vmem:[%s5 + $0x158] sm:$0xff]
        %v607 = vld [vmem:[%s5 + $0x160] sm:$0xff]
        %v608 = vld [vmem:[%s5 + $0x168] sm:$0xff]
        %v609 = vld [vmem:[%s5 + $0x170] sm:$0xff]
        %v610 = vld [vmem:[%s5 + $0x178] sm:$0xff]
        %v659 = vunpack.c.l.b16 %v563
        %v660 = vunpack.c.h.b16 %v563
        %v661 = vunpack.c.l.b16 %v564
        %v662 = vunpack.c.h.b16 %v564
        %v663 = vunpack.c.l.b16 %v565
        %v664 = vunpack.c.h.b16 %v565
        %v665 = vunpack.c.l.b16 %v566
        %v666 = vunpack.c.h.b16 %v566
        %v667 = vunpack.c.l.b16 %v567
        %v668 = vunpack.c.h.b16 %v567
        %v669 = vunpack.c.l.b16 %v568
        %v670 = vunpack.c.h.b16 %v568
        %v671 = vunpack.c.l.b16 %v569
        %v672 = vunpack.c.h.b16 %v569
        %v673 = vunpack.c.l.b16 %v570
        %v674 = vunpack.c.h.b16 %v570
        %v675 = vunpack.c.l.b16 %v571
        %v676 = vunpack.c.h.b16 %v571
        %v677 = vunpack.c.l.b16 %v572
        %v678 = vunpack.c.h.b16 %v572
        %v679 = vunpack.c.l.b16 %v573
        %v680 = vunpack.c.h.b16 %v573
        %v681 = vunpack.c.l.b16 %v574
        %v682 = vunpack.c.h.b16 %v574
        %v683 = vunpack.c.l.b16 %v575
        %v684 = vunpack.c.h.b16 %v575
        %v685 = vunpack.c.l.b16 %v576
        %v686 = vunpack.c.h.b16 %v576
        %v687 = vunpack.c.l.b16 %v577
        %v688 = vunpack.c.h.b16 %v577
        %v689 = vunpack.c.l.b16 %v578
        %v690 = vunpack.c.h.b16 %v578
        %v691 = vunpack.c.l.b16 %v579
        %v692 = vunpack.c.h.b16 %v579
        %v693 = vunpack.c.l.b16 %v580
        %v694 = vunpack.c.h.b16 %v580
        %v695 = vunpack.c.l.b16 %v581
        %v696 = vunpack.c.h.b16 %v581
        %v697 = vunpack.c.l.b16 %v582
        %v698 = vunpack.c.h.b16 %v582
        %v699 = vunpack.c.l.b16 %v583
        %v700 = vunpack.c.h.b16 %v583
        %v701 = vunpack.c.l.b16 %v584
        %v702 = vunpack.c.h.b16 %v584
        %v703 = vunpack.c.l.b16 %v585
        %v704 = vunpack.c.h.b16 %v585
        %v705 = vunpack.c.l.b16 %v586
        %v706 = vunpack.c.h.b16 %v586
        %v707 = vunpack.c.l.b16 %v587
        %v708 = vunpack.c.h.b16 %v587
        %v709 = vunpack.c.l.b16 %v588
        %v710 = vunpack.c.h.b16 %v588
        %v711 = vunpack.c.l.b16 %v589
        %v712 = vunpack.c.h.b16 %v589
        %v713 = vunpack.c.l.b16 %v590
        %v714 = vunpack.c.h.b16 %v590
        %v715 = vunpack.c.l.b16 %v591
        %v716 = vunpack.c.h.b16 %v591
        %v717 = vunpack.c.l.b16 %v592
        %v718 = vunpack.c.h.b16 %v592
        %v719 = vunpack.c.l.b16 %v593
        %v720 = vunpack.c.h.b16 %v593
        %v721 = vunpack.c.l.b16 %v594
        %v722 = vunpack.c.h.b16 %v594
        %v723 = vunpack.c.l.b16 %v595
        %v724 = vunpack.c.h.b16 %v595
        %v725 = vunpack.c.l.b16 %v596
        %v726 = vunpack.c.h.b16 %v596
        %v727 = vunpack.c.l.b16 %v597
        %v728 = vunpack.c.h.b16 %v597
        %v729 = vunpack.c.l.b16 %v598
        %v730 = vunpack.c.h.b16 %v598
        %v731 = vunpack.c.l.b16 %v599
        %v732 = vunpack.c.h.b16 %v599
        %v733 = vunpack.c.l.b16 %v600
        %v734 = vunpack.c.h.b16 %v600
        %v735 = vunpack.c.l.b16 %v601
        %v736 = vunpack.c.h.b16 %v601
        %v737 = vunpack.c.l.b16 %v602
        %v738 = vunpack.c.h.b16 %v602
        %v739 = vunpack.c.l.b16 %v603
        %v740 = vunpack.c.h.b16 %v603
        %v741 = vunpack.c.l.b16 %v604
        %v742 = vunpack.c.h.b16 %v604
        %v743 = vunpack.c.l.b16 %v605
        %v744 = vunpack.c.h.b16 %v605
        %v745 = vunpack.c.l.b16 %v606
        %v746 = vunpack.c.h.b16 %v606
        %v747 = vunpack.c.l.b16 %v607
        %v748 = vunpack.c.h.b16 %v607
        %v749 = vunpack.c.l.b16 %v608
        %v750 = vunpack.c.h.b16 %v608
        %v751 = vunpack.c.l.b16 %v609
        %v752 = vunpack.c.h.b16 %v609
        %v753 = vunpack.c.l.b16 %v610
        %v754 = vunpack.c.h.b16 %v610
        %v755 = vpack.c.b16 %v665, %v659
        %v756 = vpack.c.b16 %v666, %v660
        %v757 = vpack.c.b16 %v667, %v661
        %v758 = vpack.c.b16 %v668, %v662
        %v759 = vpack.c.b16 %v669, %v663
        %v760 = vpack.c.b16 %v670, %v664
        %v761 = vpack.c.b16 %v677, %v671
        %v762 = vpack.c.b16 %v678, %v672
        %v763 = vpack.c.b16 %v679, %v673
        %v764 = vpack.c.b16 %v680, %v674
        %v765 = vpack.c.b16 %v681, %v675
        %v766 = vpack.c.b16 %v682, %v676
        %v767 = vpack.c.b16 %v689, %v683
        %v768 = vpack.c.b16 %v690, %v684
        %v769 = vpack.c.b16 %v691, %v685
        %v770 = vpack.c.b16 %v692, %v686
        %v771 = vpack.c.b16 %v693, %v687
        %v772 = vpack.c.b16 %v694, %v688
        %v773 = vpack.c.b16 %v701, %v695
        %v774 = vpack.c.b16 %v702, %v696
        %v775 = vpack.c.b16 %v703, %v697
        %v776 = vpack.c.b16 %v704, %v698
        %v777 = vpack.c.b16 %v705, %v699
        %v778 = vpack.c.b16 %v706, %v700
        %v779 = vpack.c.b16 %v713, %v707
        %v780 = vpack.c.b16 %v714, %v708
        %v781 = vpack.c.b16 %v715, %v709
        %v782 = vpack.c.b16 %v716, %v710
        %v783 = vpack.c.b16 %v717, %v711
        %v784 = vpack.c.b16 %v718, %v712
        %v785 = vpack.c.b16 %v725, %v719
        %v786 = vpack.c.b16 %v726, %v720
        %v787 = vpack.c.b16 %v727, %v721
        %v788 = vpack.c.b16 %v728, %v722
        %v789 = vpack.c.b16 %v729, %v723
        %v790 = vpack.c.b16 %v730, %v724
        %v791 = vpack.c.b16 %v737, %v731
        %v792 = vpack.c.b16 %v738, %v732
        %v793 = vpack.c.b16 %v739, %v733
        %v794 = vpack.c.b16 %v740, %v734
        %v795 = vpack.c.b16 %v741, %v735
        %v796 = vpack.c.b16 %v742, %v736
        %v797 = vpack.c.b16 %v749, %v743
        %v798 = vpack.c.b16 %v750, %v744
        %v799 = vpack.c.b16 %v751, %v745
        %v800 = vpack.c.b16 %v752, %v746
        %v801 = vpack.c.b16 %v753, %v747
        %v802 = vpack.c.b16 %v754, %v748
        %851 = vmatprep.subr.bf16.mxu0 %v798
        %852 = vmatpush1.bf16.msra.mxu0 %v797
        %853 = vmatprep.subr.bf16.mxu0 %v792
        %854 = vmatpush1.bf16.msra.mxu0 %v791
        %855 = vmatprep.subr.bf16.mxu0 %v786
        %856 = vmatpush1.bf16.msra.mxu0 %v785
        %857 = vmatprep.subr.bf16.mxu0 %v780
        %858 = vmatpush1.bf16.msra.mxu0 %v779
        %859 = vmatprep.subr.bf16.mxu0 %v774
        %860 = vmatpush1.bf16.msra.mxu0 %v773
        %861 = vmatprep.subr.bf16.mxu0 %v768
        %862 = vmatpush1.bf16.msra.mxu0 %v767
        %863 = vmatprep.subr.bf16.mxu0 %v762
        %864 = vmatpush1.bf16.msra.mxu0 %v761
        %865 = vmatprep.subr.bf16.mxu0 %v756
        %866 = vmatpush1.bf16.msra.mxu0 %v755
        %867 = vmatprep.subr.bf16.mxu0 0
        %868 = vmatpush2.bf16.msra.mxu0 0
        %869 = vmatprep.subr.bf16.mxu0 0
        %870 = vmatpush2.bf16.msra.mxu0 0
        %871 = vmatprep.subr.bf16.mxu0 0
        %872 = vmatpush2.bf16.msra.mxu0 0
        %873 = vmatprep.subr.bf16.mxu0 0
        %874 = vmatpush2.bf16.msra.mxu0 0
        %875 = vmatprep.subr.bf16.mxu0 0
        %876 = vmatpush2.bf16.msra.mxu0 0
        %877 = vmatprep.subr.bf16.mxu0 0
        %878 = vmatpush2.bf16.msra.mxu0 0
        %879 = vmatprep.subr.bf16.mxu0 0
        %880 = vmatpush2.bf16.msra.mxu0 0
        %881 = vmatprep.subr.bf16.mxu0 0
        %882 = vmatpush2.bf16.msra.mxu0 0
        %883 = vmatprep.mubr.bf16.mxu0 0
        %884 = vmatmul.mubr.bf16.gmra.mxu0 %v561
        %v885 = vpop.f32.mrf.mxu0
        %v886 = vadd.f32 0.0, %v885
        %v887 = vpop.f32.mrf.mxu0
        %v888 = vadd.f32 0.0, %v887
        %v889 = vpop.f32.mrf.mxu0
        %v890 = vadd.f32 0.0, %v889
        %v891 = vpop.f32.mrf.mxu0
        %v892 = vadd.f32 0.0, %v891
        %893 = vmatprep.mubr.bf16.mxu0 0
        %894 = vmatmul.mubr.bf16.gmra.mxu0 %v562
        %v895 = vpop.f32.mrf.mxu0
        %v896 = vadd.f32 0.0, %v895
        %v897 = vpop.f32.mrf.mxu0
        %v898 = vadd.f32 0.0, %v897
        %v899 = vpop.f32.mrf.mxu0
        %v900 = vadd.f32 0.0, %v899
        %v901 = vpop.f32.mrf.mxu0
        %v902 = vadd.f32 0.0, %v901
        %903 = vdwg.mxu0
        %904 = vmatprep.subr.bf16.mxu0 %v800
        %905 = vmatpush1.bf16.msra.mxu0 %v799
        %906 = vmatprep.subr.bf16.mxu0 %v794
        %907 = vmatpush1.bf16.msra.mxu0 %v793
        %908 = vmatprep.subr.bf16.mxu0 %v788
        %909 = vmatpush1.bf16.msra.mxu0 %v787
        %910 = vmatprep.subr.bf16.mxu0 %v782
        %911 = vmatpush1.bf16.msra.mxu0 %v781
        %912 = vmatprep.subr.bf16.mxu0 %v776
        %913 = vmatpush1.bf16.msra.mxu0 %v775
        %914 = vmatprep.subr.bf16.mxu0 %v770
        %915 = vmatpush1.bf16.msra.mxu0 %v769
        %916 = vmatprep.subr.bf16.mxu0 %v764
        %917 = vmatpush1.bf16.msra.mxu0 %v763
        %918 = vmatprep.subr.bf16.mxu0 %v758
        %919 = vmatpush1.bf16.msra.mxu0 %v757
        %920 = vmatprep.subr.bf16.mxu0 0
        %921 = vmatpush2.bf16.msra.mxu0 0
        %922 = vmatprep.subr.bf16.mxu0 0
        %923 = vmatpush2.bf16.msra.mxu0 0
        %924 = vmatprep.subr.bf16.mxu0 0
        %925 = vmatpush2.bf16.msra.mxu0 0
        %926 = vmatprep.subr.bf16.mxu0 0
        %927 = vmatpush2.bf16.msra.mxu0 0
        %928 = vmatprep.subr.bf16.mxu0 0
        %929 = vmatpush2.bf16.msra.mxu0 0
        %930 = vmatprep.subr.bf16.mxu0 0
        %931 = vmatpush2.bf16.msra.mxu0 0
        %932 = vmatprep.subr.bf16.mxu0 0
        %933 = vmatpush2.bf16.msra.mxu0 0
        %934 = vmatprep.subr.bf16.mxu0 0
        %935 = vmatpush2.bf16.msra.mxu0 0
        %936 = vmatprep.mubr.bf16.mxu0 0
        %937 = vmatmul.mubr.bf16.gmra.mxu0 %v561
        %v938 = vpop.f32.mrf.mxu0
        %v939 = vadd.f32 0.0, %v938
        %v940 = vpop.f32.mrf.mxu0
        %v941 = vadd.f32 0.0, %v940
        %v942 = vpop.f32.mrf.mxu0
        %v943 = vadd.f32 0.0, %v942
        %v944 = vpop.f32.mrf.mxu0
        %v945 = vadd.f32 0.0, %v944
        %946 = vmatprep.mubr.bf16.mxu0 0
        %947 = vmatmul.mubr.bf16.gmra.mxu0 %v562
        %v948 = vpop.f32.mrf.mxu0
        %v949 = vadd.f32 0.0, %v948
        %v950 = vpop.f32.mrf.mxu0
        %v951 = vadd.f32 0.0, %v950
        %v952 = vpop.f32.mrf.mxu0
        %v953 = vadd.f32 0.0, %v952
        %v954 = vpop.f32.mrf.mxu0
        %v955 = vadd.f32 0.0, %v954
        %956 = vdwg.mxu0
        %957 = vmatprep.subr.bf16.mxu0 %v802
        %958 = vmatpush1.bf16.msra.mxu0 %v801
        %959 = vmatprep.subr.bf16.mxu0 %v796
        %960 = vmatpush1.bf16.msra.mxu0 %v795
        %961 = vmatprep.subr.bf16.mxu0 %v790
        %962 = vmatpush1.bf16.msra.mxu0 %v789
        %963 = vmatprep.subr.bf16.mxu0 %v784
        %964 = vmatpush1.bf16.msra.mxu0 %v783
        %965 = vmatprep.subr.bf16.mxu0 %v778
        %966 = vmatpush1.bf16.msra.mxu0 %v777
        %967 = vmatprep.subr.bf16.mxu0 %v772
        %968 = vmatpush1.bf16.msra.mxu0 %v771
        %969 = vmatprep.subr.bf16.mxu0 %v766
        %970 = vmatpush1.bf16.msra.mxu0 %v765
        %971 = vmatprep.subr.bf16.mxu0 %v760
        %972 = vmatpush1.bf16.msra.mxu0 %v759
        %973 = vmatprep.subr.bf16.mxu0 0
        %974 = vmatpush2.bf16.msra.mxu0 0
        %975 = vmatprep.subr.bf16.mxu0 0
        %976 = vmatpush2.bf16.msra.mxu0 0
        %977 = vmatprep.subr.bf16.mxu0 0
        %978 = vmatpush2.bf16.msra.mxu0 0
        %979 = vmatprep.subr.bf16.mxu0 0
        %980 = vmatpush2.bf16.msra.mxu0 0
        %981 = vmatprep.subr.bf16.mxu0 0
        %982 = vmatpush2.bf16.msra.mxu0 0
        %983 = vmatprep.subr.bf16.mxu0 0
        %984 = vmatpush2.bf16.msra.mxu0 0
        %985 = vmatprep.subr.bf16.mxu0 0
        %986 = vmatpush2.bf16.msra.mxu0 0
        %987 = vmatprep.subr.bf16.mxu0 0
        %988 = vmatpush2.bf16.msra.mxu0 0
        %989 = vmatprep.mubr.bf16.mxu0 0
        %990 = vmatmul.mubr.bf16.gmra.mxu0 %v561
        %v991 = vpop.f32.mrf.mxu0
        %v992 = vadd.f32 0.0, %v991
        %v993 = vpop.f32.mrf.mxu0
        %v994 = vadd.f32 0.0, %v993
        %v995 = vpop.f32.mrf.mxu0
        %v996 = vadd.f32 0.0, %v995
        %v997 = vpop.f32.mrf.mxu0
        %v998 = vadd.f32 0.0, %v997
        %999 = vmatprep.mubr.bf16.mxu0 0
        %1000 = vmatmul.mubr.bf16.gmra.mxu0 %v562
        %v1001 = vpop.f32.mrf.mxu0
        %v1002 = vadd.f32 0.0, %v1001
        %v1003 = vpop.f32.mrf.mxu0
        %v1004 = vadd.f32 0.0, %v1003
        %v1005 = vpop.f32.mrf.mxu0
        %v1006 = vadd.f32 0.0, %v1005
        %v1007 = vpop.f32.mrf.mxu0
        %v1008 = vadd.f32 0.0, %v1007
        %1009 = vdwg.mxu0
        %v1010 = vpack.c.bf16 %v890, %v886
        %v1011 = vpack.c.bf16 %v892, %v888
        %v1012 = vpack.c.bf16 %v943, %v939
        %v1013 = vpack.c.bf16 %v945, %v941
        %v1014 = vpack.c.bf16 %v996, %v992
        %v1015 = vpack.c.bf16 %v998, %v994
        %v1016 = vpack.c.bf16 %v900, %v896
        %v1017 = vpack.c.bf16 %v902, %v898
        %v1018 = vpack.c.bf16 %v953, %v949
        %v1019 = vpack.c.bf16 %v955, %v951
        %v1020 = vpack.c.bf16 %v1006, %v1002
        %v1021 = vpack.c.bf16 %v1008, %v1004
        %v1022 = vld [vmem:[%s4] sm:$0xf]
        %v1023 = vld [vmem:[%s4 + $0x4] sm:$0xf]
        %v1024 = vld [vmem:[%s4 + $0x8] sm:$0xf]
        %v1025 = vld [vmem:[%s4 + $0xc] sm:$0xf]
        %v1026 = vld [vmem:[%s4 + $0x10] sm:$0xf]
        %v1027 = vld [vmem:[%s4 + $0x14] sm:$0xf]
        %v1028 = vld [vmem:[%s4 + $0x18] sm:$0xf]
        %v1029 = vld [vmem:[%s4 + $0x1c] sm:$0xf]
        %v1030 = vld [vmem:[%s6] sm:$0x3]
        %v1032 = vlaneseq
        %v1033 = vshrl.u32 %v1032, 7
        %v1034 = vsub.s32 0, %v1033
        %v1035 = vrot.slane %v1030, %v1034
        %v1036 = vlaneseq
        %v1037 = vshrl.u32 %v1036, 7
        %v1038 = vsub.s32 1, %v1037
        %v1039 = vrot.slane %v1030, %v1038
        %v1050 = vunpack.c.l.b16 %v1022
        %v1051 = vunpack.c.l.b16 %v1023
        %v1052 = vunpack.c.l.b16 %v1024
        %v1053 = vunpack.c.l.b16 %v1025
        %v1054 = vunpack.c.l.b16 %v1026
        %v1055 = vunpack.c.l.b16 %v1027
        %v1056 = vunpack.c.l.b16 %v1028
        %v1057 = vunpack.c.l.b16 %v1029
        %v1058 = vpack.c.b16 %v1051, %v1050
        %v1059 = vpack.c.b16 %v1053, %v1052
        %v1060 = vpack.c.b16 %v1055, %v1054
        %v1061 = vpack.c.b16 %v1057, %v1056
        %vm1062 = vcmask 785408
        %v1064 = vsel %vm1062, %v1058, 0
        %v1067 = vsel %vm1062, %v1059, 0
        %v1070 = vsel %vm1062, %v1060, 0
        %v1073 = vsel %vm1062, %v1061, 0
        %1075 = vmatprep.subr.bf16.mxu0 0
        %1076 = vmatpush1.bf16.msra.mxu0 0
        %1077 = vmatprep.subr.bf16.mxu0 0
        %1078 = vmatpush1.bf16.msra.mxu0 0
        %1079 = vmatprep.subr.bf16.mxu0 %v1021
        %1080 = vmatpush1.bf16.msra.mxu0 %v1020
        %1081 = vmatprep.subr.bf16.mxu0 %v1015
        %1082 = vmatpush1.bf16.msra.mxu0 %v1014
        %1083 = vmatprep.subr.bf16.mxu0 %v1019
        %1084 = vmatpush1.bf16.msra.mxu0 %v1018
        %1085 = vmatprep.subr.bf16.mxu0 %v1013
        %1086 = vmatpush1.bf16.msra.mxu0 %v1012
        %1087 = vmatprep.subr.bf16.mxu0 %v1017
        %1088 = vmatpush1.bf16.msra.mxu0 %v1016
        %1089 = vmatprep.subr.bf16.mxu0 %v1011
        %1090 = vmatpush1.bf16.msra.mxu0 %v1010
        %1091 = vmatprep.subr.bf16.mxu0 0
        %1092 = vmatpush2.bf16.msra.mxu0 0
        %1093 = vmatprep.subr.bf16.mxu0 0
        %1094 = vmatpush2.bf16.msra.mxu0 0
        %1095 = vmatprep.subr.bf16.mxu0 0
        %1096 = vmatpush2.bf16.msra.mxu0 0
        %1097 = vmatprep.subr.bf16.mxu0 0
        %1098 = vmatpush2.bf16.msra.mxu0 0
        %1099 = vmatprep.subr.bf16.mxu0 0
        %1100 = vmatpush2.bf16.msra.mxu0 0
        %1101 = vmatprep.subr.bf16.mxu0 0
        %1102 = vmatpush2.bf16.msra.mxu0 0
        %1103 = vmatprep.subr.bf16.mxu0 0
        %1104 = vmatpush2.bf16.msra.mxu0 0
        %1105 = vmatprep.subr.bf16.mxu0 0
        %1106 = vmatpush2.bf16.msra.mxu0 0
        %1107 = vmatprep.mubr.bf16.mxu0 0
        %1108 = vmatmul.mubr.bf16.gmra.mxu0 %v1064
        %v1109 = vpop.f32.mrf.mxu0
        %v1110 = vadd.f32 %v1035, %v1109
        %v1111 = vpop.f32.mrf.mxu0
        %v1112 = vadd.f32 %v1039, %v1111
        %v1113 = vpop.f32.mrf.mxu0
        %v1114 = vadd.f32 %v1035, %v1113
        %v1115 = vpop.f32.mrf.mxu0
        %v1116 = vadd.f32 %v1039, %v1115
        %1117 = vmatprep.mubr.bf16.mxu0 0
        %1118 = vmatmul.mubr.bf16.gmra.mxu0 %v1067
        %v1119 = vpop.f32.mrf.mxu0
        %v1120 = vadd.f32 %v1035, %v1119
        %v1121 = vpop.f32.mrf.mxu0
        %v1122 = vadd.f32 %v1039, %v1121
        %v1123 = vpop.f32.mrf.mxu0
        %v1124 = vadd.f32 %v1035, %v1123
        %v1125 = vpop.f32.mrf.mxu0
        %v1126 = vadd.f32 %v1039, %v1125
        %1127 = vmatprep.mubr.bf16.mxu0 0
        %1128 = vmatmul.mubr.bf16.gmra.mxu0 %v1070
        %v1129 = vpop.f32.mrf.mxu0
        %v1130 = vadd.f32 %v1035, %v1129
        %v1131 = vpop.f32.mrf.mxu0
        %v1132 = vadd.f32 %v1039, %v1131
        %v1133 = vpop.f32.mrf.mxu0
        %v1134 = vadd.f32 %v1035, %v1133
        %v1135 = vpop.f32.mrf.mxu0
        %v1136 = vadd.f32 %v1039, %v1135
        %1137 = vmatprep.mubr.bf16.mxu0 0
        %1138 = vmatmul.mubr.bf16.gmra.mxu0 %v1073
        %v1139 = vpop.f32.mrf.mxu0
        %v1140 = vadd.f32 %v1035, %v1139
        %v1141 = vpop.f32.mrf.mxu0
        %v1142 = vadd.f32 %v1039, %v1141
        %v1143 = vpop.f32.mrf.mxu0
        %v1144 = vadd.f32 %v1035, %v1143
        %v1145 = vpop.f32.mrf.mxu0
        %v1146 = vadd.f32 %v1039, %v1145
        %1147 = vdwg.mxu0
        %1148 = vst [vmem:[%s308] sm:$0xff] %v1110
        %1149 = vst [vmem:[%s308 + $0x8] sm:$0xff] %v1112
        %1150 = vst [vmem:[%s308 + $0x10] sm:$0xff] %v1114
        %1151 = vst [vmem:[%s308 + $0x18] sm:$0xff] %v1116
        %1152 = vst [vmem:[%s308 + $0x20] sm:$0xff] %v1120
        %1153 = vst [vmem:[%s308 + $0x28] sm:$0xff] %v1122
        %1154 = vst [vmem:[%s308 + $0x30] sm:$0xff] %v1124
        %1155 = vst [vmem:[%s308 + $0x38] sm:$0xff] %v1126
        %1156 = vst [vmem:[%s308 + $0x40] sm:$0xff] %v1130
        %1157 = vst [vmem:[%s308 + $0x48] sm:$0xff] %v1132
        %1158 = vst [vmem:[%s308 + $0x50] sm:$0xff] %v1134
        %1159 = vst [vmem:[%s308 + $0x58] sm:$0xff] %v1136
        %1160 = vst [vmem:[%s308 + $0x60] sm:$0xff] %v1140
        %1161 = vst [vmem:[%s308 + $0x68] sm:$0xff] %v1142
        %1162 = vst [vmem:[%s308 + $0x70] sm:$0xff] %v1144
        %1163 = vst [vmem:[%s308 + $0x78] sm:$0xff] %v1146
        %p1164 = scmp.lt.s32.totalorder %s20, 1
        %s1165 = scalar_select %p1164, %s20, 1
        %s1166 = smul.addr %s1165, 16
        %s1167 = smul.addr %s1166, 8
        %s1168 = scalar_lea.vmem %s7, %s1167
        // Predicated region
        $region57: #{up_conv_forward.1} parent=47 // pred_check
          %p1169 = pneg %p190
        $region58: #{up_conv_forward.1} parent=47 // pred_check_branch
          %1171 = sbr.rel (%p1169) target = $region60
        $region59: #{up_conv_forward.1} parent=47 // pred_region
          _
        $region60: #{up_conv_forward.1} parent=47 // pred_fallthru
          _
      $region48: #{up_conv_forward.1} parent=5 // pred_fallthru
        _
      %p1172 = scmp.le.s32.totalorder 2, %s15
      // Predicated region
      $region61: #{up_conv_forward.1} parent=5 // pred_check
        %p1173 = pneg %p1172
      $region62: #{up_conv_forward.1} parent=5 // pred_check_branch
        %1175 = sbr.rel (%p1173) target = $region64
      $region63: #{up_conv_forward.1} parent=5 // pred_region
        %s1176 = ssub.s32 %s15, 2
        // Predicated region
        $region65: #{up_conv_forward.1} parent=63 // pred_check
          %p1177 = pneg %p196
        $region66: #{up_conv_forward.1} parent=63 // pred_check_branch
          %1179 = sbr.rel (%p1177) target = $region68
        $region67: #{up_conv_forward.1} parent=63 // pred_region
          %p1180 = scmp.lt.s32.totalorder %s21, 1
          %s1181 = scalar_select %p1180, %s21, 1
          %s1182 = smul.addr %s1181, 16
          %s1183 = smul.addr %s1182, 8
          %s1184 = scalar_lea.vmem %s7, %s1183
        $region68: #{up_conv_forward.1} parent=63 // pred_fallthru
          _
      $region64: #{up_conv_forward.1} parent=5 // pred_fallthru
        _
    $region6: #{up_conv_forward.1} parent=1 // loop_footer
      %s19 = sadd.s32 1, %s15
    $region7: #{up_conv_forward.1} parent=1 // loop_footer_branch
      %14 = sbr.rel target = $region3
    $region8: #{up_conv_forward.1} parent=1 // loop_exit
      _
    %1185 = vsyncpa [#allocation3], 1
    %s1186 = scalar_lea.sflag [#allocation3], 1
    %1187 = vsyncpa %s1186, 1
    %1188 = vsyncpa [#allocation5], 1

</llo_original>
